<compile_context>
chip_gen: v6e
topology: v6e:2x2x1
jax: 0.10.0
libtpu: 0.0.40
codegen_flags: <defaults>
</compile_context>

<pallas_src>
import functools

import jax
import jax.numpy as jnp
from jax.experimental import pallas as pl
from jax.experimental.pallas import tpu as pltpu


def _cdiv(a, b):
    return -(-a // b)


def _round_up(x, m):
    return ((x + m - 1) // m) * m


def _choose_tile(n, c):
    """Largest row tile (multiple of 128) whose double-buffered footprint stays
    within a conservative 4 MiB/buffer budget (safe on v5e/v6e/v7x)."""
    c_pad = _round_up(c, 128)                    # pred lane padding in VMEM
    per_row_bytes = c_pad * 4 + 4                # f32 pred row + lane-dense int32 target
    budget_per_buffer = 4 * 1024 * 1024          # x2 double-buffering => ~8 MiB of inputs
    tile = budget_per_buffer // per_row_bytes
    return max(128, (tile // 128) * 128)


def _nll_full_kernel(pred_ref, target_ref, out_ref, *, inv_n):
    """Fast path (grid == 1): whole (N, C) pred in VMEM, loss finished in-kernel."""
    pred = pred_ref[...].astype(jnp.float32)            # (N, C)
    n, c = pred.shape
    tgt = target_ref[...].reshape(n, 1)                 # lane-dense (1,N) -> (N,1) column
    col = jax.lax.broadcasted_iota(jnp.int32, (n, c), 1)
    picked = jnp.where(col == tgt, pred, 0.0)           # select (not multiply): no 0*(-inf)
    out_ref[...] = jnp.sum(picked, keepdims=True) * (-inv_n)


def _nll_partial_kernel(pred_ref, target_ref, out_ref, *, n_total, tile):
    """Row-tiled partial sums; padding mask only on the (static) ragged last block."""
    pred = pred_ref[...].astype(jnp.float32)            # (T, C)
    t, c = pred.shape
    tgt = target_ref[...].reshape(t, 1)                 # (1,T) -> (T,1)
    col = jax.lax.broadcasted_iota(jnp.int32, (t, c), 1)
    base_mask = col == tgt

    def write(mask):
        picked = jnp.where(mask, pred, 0.0)
        # Row-group accumulation: VALU adds into an (8, C) tile; no scalar
        # reduce / broadcast.  Wrapper does one dense jnp.sum over partials.
        acc8 = picked.reshape(t // 8, 8, c).sum(axis=0)
        out_ref[...] = acc8[None]

    rem = n_total % tile                                 # static Python int
    if rem == 0:
        write(base_mask)
    else:
        last = pl.num_programs(0) - 1

        @pl.when(pl.program_id(0) != last)
        def _():
            write(base_mask)

        @pl.when(pl.program_id(0) == last)
        def _():
            row = jax.lax.broadcasted_iota(jnp.int32, (t, c), 0)
            write(base_mask & (row < rem))


def get_loss_forward(pred, target, trans_feat=None, *, tile=None):
    """Mean NLL loss, matching F.nll_loss(pred, target). trans_feat is unused
    (the reference get_loss.forward ignores it)."""
    del trans_feat
    n, c = pred.shape
    tgt = target.astype(jnp.int32).reshape(1, n)         # lane-dense target layout

    tile_sz = _choose_tile(n, c) if tile is None else tile

    if n <= tile_sz:
        # ---- fast path: single kernel, loss fully computed in-kernel ----
        out = pl.pallas_call(
            functools.partial(_nll_full_kernel, inv_n=1.0 / n),
            out_shape=jax.ShapeDtypeStruct((1, 1), jnp.float32),
            grid=(1,),
            in_specs=[
                pl.BlockSpec((n, c), lambda i: (0, 0)),
                pl.BlockSpec((1, n), lambda i: (0, 0)),
            ],
            out_specs=pl.BlockSpec((1, 1), lambda i: (0, 0)),
        )(pred, tgt)
        return out[0, 0].astype(pred.dtype)

    # ---- multi-tile path ----
    # Lane-dense target blocks require tile to be a multiple of 128.
    tile_sz = max(128, (tile_sz // 128) * 128)
    grid = _cdiv(n, tile_sz)
    if tile is None and grid > 1 and grid % 2 == 1:
        # Nudge to an even grid so both v7x TensorCores stay busy.
        cand = _round_up(_cdiv(n, grid + 1), 128)
        if 128 <= cand < tile_sz and _cdiv(n, cand) % 2 == 0:
            tile_sz = cand
            grid = _cdiv(n, cand)

    partials = pl.pallas_call(
        functools.partial(_nll_partial_kernel, n_total=n, tile=tile_sz),
        out_shape=jax.ShapeDtypeStruct((grid, 8, c), jnp.float32),
        grid=(grid,),
        in_specs=[
            pl.BlockSpec((tile_sz, c), lambda i: (i, 0)),
            pl.BlockSpec((1, tile_sz), lambda i: (0, i)),
        ],
        out_specs=pl.BlockSpec((1, 8, c), lambda i: (i, 0, 0)),
        compiler_params=pltpu.CompilerParams(
            dimension_semantics=("parallel",),
        ),
    )(pred, tgt)

    total = jnp.sum(partials)                             # dense reduce, no strided gather
    loss = -(total / jnp.asarray(n, jnp.float32))
    return loss.astype(pred.dtype)


if __name__ == "__main__":
    key = jax.random.PRNGKey(0)
    k1, k2, k3, k4, k5, k6, k7 = jax.random.split(key, 7)

    # --- Test 1: PointNet++-like small shapes (single-kernel fast path) ---
    N, C = 8, 16
    logits = jax.random.normal(k1, (N, C), dtype=jnp.float32)
    pred = jax.nn.log_softmax(logits, axis=-1)
    target = jax.random.randint(k2, (N,), 0, C, dtype=jnp.int32)
    trans_feat = jax.random.normal(k3, (N, 3, 3), dtype=jnp.float32)  # unused by the loss

    loss = jax.block_until_ready(get_loss_forward(pred, target, trans_feat))
    ref = -jnp.mean(pred[jnp.arange(N), target])
    assert jnp.allclose(loss, ref, atol=1e-6, rtol=1e-6), (loss, ref)

    # --- Test 2: multi-tile grid with a ragged (padded) last block ---
    N2, C2 = 300, 16
    logits2 = jax.random.normal(k4, (N2, C2), dtype=jnp.float32)
    pred2 = jax.nn.log_softmax(logits2, axis=-1)
    target2 = jax.random.randint(k5, (N2,), 0, C2, dtype=jnp.int32)

    loss2 = jax.block_until_ready(get_loss_forward(pred2, target2, None, tile=128))
    ref2 = -jnp.mean(pred2[jnp.arange(N2), target2])
    assert jnp.allclose(loss2, ref2, atol=1e-6, rtol=1e-6), (loss2, ref2)

    # --- Test 3: multi-tile grid, evenly divisible (no row-mask branch) ---
    N3, C3 = 256, 16
    logits3 = jax.random.normal(k6, (N3, C3), dtype=jnp.float32)
    pred3 = jax.nn.log_softmax(logits3, axis=-1)
    target3 = jax.random.randint(k7, (N3,), 0, C3, dtype=jnp.int32)

    loss3 = jax.block_until_ready(get_loss_forward(pred3, target3, None, tile=128))
    ref3 = -jnp.mean(pred3[jnp.arange(N3), target3])
    assert jnp.allclose(loss3, ref3, atol=1e-6, rtol=1e-6), (loss3, ref3)

    print("KERNEL_OK")
</pallas_src>

<mosaic_0001>
module attributes {stable_mosaic.version = 11 : i64} {
  func.func @_nll_full_kernel(%arg0: i32, %arg1: memref<8x16xf32, #tpu.memory_space<vmem>>, %arg2: memref<1x8xi32, #tpu.memory_space<vmem>>, %arg3: memref<1x1xf32, #tpu.memory_space<vmem>>) attributes {dimension_semantics = [#tpu.dimension_semantics<arbitrary>], iteration_bounds = array<i64: 1>, scalar_prefetch = 0 : i64, scratch_operands = 0 : i64, tpu.core_type = #tpu.core_type<tc>, window_params = [{pipeline_mode = #tpu.pipeline_mode<synchronous>, transform_indices = @transform_0, window_bounds = array<i64: 8, 16>}, {pipeline_mode = #tpu.pipeline_mode<synchronous>, transform_indices = @transform_1, window_bounds = array<i64: 1, 8>}, {pipeline_mode = #tpu.pipeline_mode<synchronous>, transform_indices = @transform_2, window_bounds = array<i64: 1, 1>}]} {
    %c0 = arith.constant 0 : index
    %c0_0 = arith.constant 0 : index
    %0 = vector.load %arg1[%c0, %c0_0] : memref<8x16xf32, #tpu.memory_space<vmem>>, vector<8x16xf32>
    %c0_1 = arith.constant 0 : index
    %c0_2 = arith.constant 0 : index
    %1 = vector.load %arg2[%c0_1, %c0_2] : memref<1x8xi32, #tpu.memory_space<vmem>>, vector<1x8xi32>
    %2 = vector.shape_cast %1 : vector<1x8xi32> to vector<8x1xi32>
    %3 = tpu.iota {dimensions = array<i32: 1>} : vector<8x16xi32>
    %4 = vector.broadcast %2 : vector<8x1xi32> to vector<8x16xi32>
    %5 = arith.cmpi eq, %3, %4 : vector<8x16xi32>
    %cst = arith.constant 0.000000e+00 : f32
    %6 = vector.broadcast %cst : f32 to vector<8x16xf32>
    %7 = arith.select %5, %0, %6 : vector<8x16xi1>, vector<8x16xf32>
    %8 = vector.shape_cast %7 : vector<8x16xf32> to vector<1x8x16xf32>
    %cst_3 = arith.constant dense<0.000000e+00> : vector<1xf32>
    %9 = vector.multi_reduction <add>, %8, %cst_3 [1, 2] : vector<1x8x16xf32> to vector<1xf32>
    %10 = vector.shape_cast %9 : vector<1xf32> to vector<1x1x1xf32>
    %11 = vector.extract %10[0, 0, 0] : f32 from vector<1x1x1xf32>
    %12 = vector.broadcast %11 : f32 to vector<1x1xf32>
    %cst_4 = arith.constant -1.250000e-01 : f32
    %13 = vector.broadcast %cst_4 : f32 to vector<1x1xf32>
    %14 = arith.mulf %12, %13 : vector<1x1xf32>
    %c0_5 = arith.constant 0 : index
    %c0_6 = arith.constant 0 : index
    %15 = vector.load %arg3[%c0_5, %c0_6] : memref<1x1xf32, #tpu.memory_space<vmem>>, vector<1x1xf32>
    tpu.vector_store %arg3[%c0_5, %c0_6], %14 {strides = array<i32>} : memref<1x1xf32, #tpu.memory_space<vmem>>, vector<1x1xf32>,
    return
  }
  func.func @transform_0(%arg0: i32) -> (i32, i32) {
    %c0_i32 = arith.constant 0 : i32
    %c0_i32_0 = arith.constant 0 : i32
    %c0_i32_1 = arith.constant 0 : i32
    return %c0_i32, %c0_i32_0 : i32, i32
  }
  func.func @transform_1(%arg0: i32) -> (i32, i32) {
    %c0_i32 = arith.constant 0 : i32
    %c0_i32_0 = arith.constant 0 : i32
    %c0_i32_1 = arith.constant 0 : i32
    return %c0_i32, %c0_i32_0 : i32, i32
  }
  func.func @transform_2(%arg0: i32) -> (i32, i32) {
    %c0_i32 = arith.constant 0 : i32
    %c0_i32_0 = arith.constant 0 : i32
    %c0_i32_1 = arith.constant 0 : i32
    return %c0_i32, %c0_i32_0 : i32, i32
  }
}

</mosaic_0001>

<llo_original>
// kernel: tpu_custom_call.1
$region0: #{tpu_custom_call.1}
  #allocation0 [shape = 'u32[]', space=smem, size = 0x4, offset = 0x4, fixed_abs, tag = 'smem constant byte address 0x4 - core index']
  #allocation1 [shape = 'u32[144,128]{1,0:T(1,128)}', space=vmem, size = 0x12000, scoped, tag = 'internal scratch']
  %s0 = inlined_call_operand.hbm [shape: f32[8,16], index: 0, kind: input, shape index: {}]
  %s1 = inlined_call_operand.vmem [shape: s32[1,8], index: 1, kind: input, shape index: {}]
  %s2 = inlined_call_operand.hbm [shape: f32[1,1], index: 2, kind: output, shape index: {}]
  %s3 = sld [smem:[#allocation0]]
  $region22: #{tpu_custom_call.1} parent=0
    _
  %s5 = ssub.s32 1, %s3
  %s6 = scalar_select 0, %s5, %s3
  $region1: #{tpu_custom_call.1} parent=0
    #allocation2 [shape = 'u8[4096]{0}', space=vmem, size = 0x1000, scoped, tag = 'input window, operand 0, single buffered']
    #allocation3 [shape = 's32[1]{0}', space=sflag, size = 0x4, scoped, tag = 'scoped memory for tpu_custom_call.1']
    #allocation4 [shape = 's32[1]{0}', space=sflag, size = 0x4, scoped, tag = 'scoped memory for tpu_custom_call.1']
    #allocation5 [shape = 'u8[512]{0}', space=vmem, size = 0x400, scoped, tag = 'output window, operand 0, single buffered']
    %7 = vsyncpa [#allocation3], 0
    %8 = vsyncpa [#allocation4], 0
    // Predicated region
    $region2: #{tpu_custom_call.1} parent=1 // pred_check
      _
    $region3: #{tpu_custom_call.1} parent=1 // pred_check_branch
      %10 = sbr.rel (0) target = $region5
    $region4: #{tpu_custom_call.1} parent=1 // pred_region
      %s12 = ssub.s32 128, 128
      %13 = vsyncadd [#allocation3], %s12
      %s15 = sshll.u32 [#allocation2], 4
      %s16 = int_to_ptr.vmem [resolvable:$true] %s15
      %18 = dma.hbm_to_vmem [thread:$0]  %s0, 128, %s16, [#allocation3]
    $region5: #{tpu_custom_call.1} parent=1 // pred_fallthru
      _
    // Predicated region
    $region6: #{tpu_custom_call.1} parent=1 // pred_check
      _
    $region7: #{tpu_custom_call.1} parent=1 // pred_check_branch
      %20 = sbr.rel (0) target = $region9
    $region8: #{tpu_custom_call.1} parent=1 // pred_region
      _
    $region9: #{tpu_custom_call.1} parent=1 // pred_fallthru
      _
    // Predicated region
    $region10: #{tpu_custom_call.1} parent=1 // pred_check
      _
    $region11: #{tpu_custom_call.1} parent=1 // pred_check_branch
      %22 = sbr.rel (0) target = $region13
    $region12: #{tpu_custom_call.1} parent=1 // pred_region
      %23 = dma.done [#allocation3], 128
    $region13: #{tpu_custom_call.1} parent=1 // pred_fallthru
      _
    %v24 = vld [vmem:[#allocation2] sm:$0xff]
    %v25 = vld [vmem:[%s1] sm:$0x1]
    %v26 = vlaneseq
    %v27 = vshrl.u32 %v26, 7
    %v28 = vsub.s32 0, %v27
    %v29 = vrot.slane %v25, %v28
    %31 = vbcast.lane.b32.xlu0 %v29, 256
    %v32 = vpop.permute.xlu0 %31
    %v33 = vlaneseq
    %v34 = vand.u32 %v33, 127
    %vm35 = vcmp.eq.s32.totalorder %v34, %v32
    %v36 = vsel %vm35, %v24, 0.0
    %vm37 = vcmask 130048
    %v38 = vsel %vm37, %v36, 0.0
    %39 = vadd.xlane.f32.xlu0 %v38
    %v40 = vpop.xlane.xlu0 %39
    %v41 = vrot.slane %v40, 4
    %v42 = vadd.f32 %v40, %v41
    %v43 = vrot.slane %v42, 2
    %v44 = vadd.f32 %v42, %v43
    %v45 = vrot.slane %v44, 1
    %v46 = vadd.f32 %v44, %v45
    %s47 = vtos %v46
    %v48 = vstv %s47
    %v49 = vmul.f32 %v48, -0.125
    %vm50 = vcmask 0
    %51 = vst.msk [vmem:[#allocation5] sm:$0x1] %vm50, %v49
    // Predicated region
    $region14: #{tpu_custom_call.1} parent=1 // pred_check
      _
    $region15: #{tpu_custom_call.1} parent=1 // pred_check_branch
      %53 = sbr.rel (0) target = $region17
    $region16: #{tpu_custom_call.1} parent=1 // pred_region
      %s55 = ssub.s32 16, 16
      %56 = vsyncadd [#allocation4], %s55
      %s58 = sshll.u32 [#allocation5], 4
      %s59 = int_to_ptr.vmem [resolvable:$true] %s58
      %61 = dma.vmem_to_hbm [thread:$0]  %s59, 16, %s2, [#allocation4]
    $region17: #{tpu_custom_call.1} parent=1 // pred_fallthru
      _
    // Predicated region
    $region18: #{tpu_custom_call.1} parent=1 // pred_check
      _
    $region19: #{tpu_custom_call.1} parent=1 // pred_check_branch
      %63 = sbr.rel (0) target = $region21
    $region20: #{tpu_custom_call.1} parent=1 // pred_region
      %64 = dma.done [#allocation4], 16
    $region21: #{tpu_custom_call.1} parent=1 // pred_fallthru
      _
    %65 = vsyncpa [#allocation3], 1
    %66 = vsyncpa [#allocation4], 1

</llo_original>
